<compile_context>
chip_gen: v6e
topology: v6e:2x2x1
jax: 0.10.0
libtpu: 0.0.40
codegen_flags: <defaults>
</compile_context>

<pallas_src>
import functools

import jax
import jax.numpy as jnp
from jax.experimental import pallas as pl
from jax.experimental.pallas import tpu as pltpu


# ---------------------------------------------------------------------------
# `Print` nn.Module: identity with a shape print.  The print is a host-side
# (trace-time) side effect; the data path is a trivial copy kernel.
# ---------------------------------------------------------------------------
def _identity_kernel(x_ref, o_ref):
    o_ref[...] = x_ref[...]


def print_forward(x, verbose=False):
    if verbose:
        print("layer input:", x.shape)
    return pl.pallas_call(
        _identity_kernel,
        out_shape=jax.ShapeDtypeStruct(x.shape, x.dtype),
    )(x)


# ------------------------- packed-slab row layout ---------------------------
# rows 0..7   (rows >= num_inputs are zero) : W1 = [wa1 | wc1]   (8, 2H)
# row  8                                    : b1 = [ba1 | bc1]   (2H,)
# row  9                                    : b2 = [ba2 | bc2]   (2H,)
# row 10                                    : wcl zero-padded to 2H lanes
# row 11, lane 0                            : bcl
# rows 16..16+2H-1                          : W2 = blockdiag(wa2, wc2) (2H, 2H)
_NI_PAD = 8
_ROW_B1 = 8
_ROW_B2 = 9
_ROW_WCL = 10
_ROW_BCL = 11
_ROW_W2 = 16


def _fused_mlpbase_kernel(x_ref, p_ref, out_ref, *, h, compute_dtype):
    """One grid step: (bm, 8) padded inputs -> (bm, 2H) lane-dense output."""
    h2 = 2 * h

    # Parameters recovered from the packed slab (static slices -> views).
    # W1 is read as the full 8-row tile; rows >= num_inputs are zero and the
    # input block is feature-padded to 8, so both layer-1 MXU operands are
    # (8,128)-aligned without changing the result.
    w1 = p_ref[0:_NI_PAD, :]                                            # (8, 2H)
    w2 = p_ref[_ROW_W2:_ROW_W2 + h2, :]                                 # (2H, 2H)
    b1 = p_ref[_ROW_B1:_ROW_B1 + 1, :].astype(jnp.float32)              # (1, 2H)
    b2 = p_ref[_ROW_B2:_ROW_B2 + 1, :].astype(jnp.float32)              # (1, 2H)
    wcl = p_ref[_ROW_WCL:_ROW_WCL + 1, :].astype(jnp.float32)           # (1, 2H)
    bcl = p_ref[_ROW_BCL:_ROW_BCL + 1, 0:1].astype(jnp.float32)         # (1, 1)

    x = x_ref[...].astype(compute_dtype)                                # (bm, 8)

    # Fused actor+critic trunk: two full-128-lane MXU matmuls.
    # Operands in compute_dtype (bf16 on v6e/v7x, f32 on v5e); f32 accumulate.
    h1 = jnp.tanh(
        jnp.dot(x, w1.astype(compute_dtype),
                preferred_element_type=jnp.float32) + b1)
    hh = jnp.tanh(
        jnp.dot(h1.astype(compute_dtype), w2.astype(compute_dtype),
                preferred_element_type=jnp.float32) + b2)
    # hh = [hidden_actor (lanes 0..H-1) | hidden_critic (lanes H..2H-1)], f32.

    # Critic head folded onto hh: zero-padded weight row + lane reduction
    # (VPU multiply + XLU reduce; kept in f32 regardless of compute_dtype).
    value = jnp.sum(hh * wcl, axis=-1, keepdims=True) + bcl             # (bm, 1)

    # Lane-dense output: actor hidden in lanes 0..H-1, value broadcast into
    # lanes H..2H-1 -> one unmasked (bm, 2H) store / output DMA.
    lane = jax.lax.broadcasted_iota(jnp.int32, hh.shape, 1)
    out_ref[...] = jnp.where(lane < h, hh, value).astype(out_ref.dtype)


def _round_up(x, m):
    return -(-x // m) * m


def _choose_bm(batch, bm_cap):
    """Rows per grid step.  Tiny batches -> one 8-row-aligned block.  Larger
    batches -> at least 2 blocks (so v7x's second TensorCore gets work), with
    per-block rows capped so input+output tiles (double-buffered) stay far
    under the default scoped-VMEM limits on every chip."""
    bp = _round_up(batch, 8)
    if bp <= 16:
        return bp
    return min(bm_cap, _round_up(pl.cdiv(bp, 2), 8))


def mlpbase_forward(inputs, rnn_hxs, masks, packed, *, num_inputs, hidden_size,
                    compute_dtype=jnp.float32, out_dtype=jnp.float32,
                    bm_cap=2048, return_packed=False):
    """Non-recurrent MLPBase.forward.  `masks`/`rnn_hxs` pass through unchanged.

    `packed` is the parameter slab from `pack_params` (f32, or bf16 on v6e/v7x
    together with compute_dtype=jnp.bfloat16).  v5e should keep everything f32.
    """
    assert hidden_size == 64, "lane-dense output scheme requires 2*hidden == 128"
    assert num_inputs <= _NI_PAD, "packed-slab layout requires num_inputs <= 8"
    B, ni = inputs.shape
    H = hidden_size
    H2 = 2 * H

    bm = _choose_bm(B, bm_cap)
    grid = (pl.cdiv(B, bm),)
    Bp = grid[0] * bm

    # Pad batch rows to a multiple of bm (never a whole-batch fallback block)
    # and features to 8 (aligned layer-1 MXU operand; the extra columns hit
    # the slab's zero weight rows, so results are unchanged).
    x = inputs
    if Bp != B or ni != _NI_PAD:
        x = jnp.pad(inputs, ((0, Bp - B), (0, _NI_PAD - ni)))

    kernel = functools.partial(_fused_mlpbase_kernel, h=H,
                               compute_dtype=compute_dtype)

    out = pl.pallas_call(
        kernel,
        out_shape=jax.ShapeDtypeStruct((Bp, H2), out_dtype),
        grid=grid,
        in_specs=[
            pl.BlockSpec((bm, _NI_PAD), lambda i: (i, 0)),
            # Constant index_map + single buffer: the weight slab is fetched
            # once, stays VMEM-resident across grid steps, and wastes no
            # second pipeline buffer.
            pl.BlockSpec(packed.shape, lambda i: (0, 0),
                         pipeline_mode=pl.Buffered(1)),
        ],
        out_specs=pl.BlockSpec((bm, H2), lambda i: (i, 0)),
        compiler_params=pltpu.CompilerParams(
            dimension_semantics=("parallel",)),
    )(x, packed)

    if return_packed:
        # Consumers that accept the lane-dense layout avoid the HBM re-read of
        # the slices below: lanes 0..H-1 = hidden_actor, lanes H.. = value.
        return out[:B], rnn_hxs

    hidden_actor = out[:B, :H]
    value = out[:B, H:H + 1].astype(jnp.float32)
    return value, hidden_actor, rnn_hxs


# ----------------------------- parameter setup ------------------------------
def _init_normc(key, out_features, in_features):
    """Mimics init_normc_: normal(0,1), normalize each output-unit row of the
    PyTorch (out, in) weight; returned transposed to (in, out) for x @ W."""
    w = jax.random.normal(key, (out_features, in_features), dtype=jnp.float32)
    w = w / jnp.sqrt(jnp.sum(w * w, axis=1, keepdims=True))
    return w.T


def make_params(key, num_inputs=4, hidden_size=64):
    ks = jax.random.split(key, 5)
    return {
        "wa1": _init_normc(ks[0], hidden_size, num_inputs),
        "ba1": jnp.zeros((1, hidden_size), jnp.float32),
        "wa2": _init_normc(ks[1], hidden_size, hidden_size),
        "ba2": jnp.zeros((1, hidden_size), jnp.float32),
        "wc1": _init_normc(ks[2], hidden_size, num_inputs),
        "bc1": jnp.zeros((1, hidden_size), jnp.float32),
        "wc2": _init_normc(ks[3], hidden_size, hidden_size),
        "bc2": jnp.zeros((1, hidden_size), jnp.float32),
        "wcl": _init_normc(ks[4], 1, hidden_size),
        "bcl": jnp.zeros((1, 1), jnp.float32),
    }


def pack_params(params, num_inputs, hidden_size, dtype=jnp.float32):
    """Pack all weights/biases into one contiguous (16 + 2H, 2H) slab.

    Use dtype=jnp.bfloat16 on v6e/v7x (with compute_dtype=bf16 in the kernel)
    to halve weight DMA bytes and keep the MXU in native bf16; keep f32 on v5e
    and for bit-tight checks.
    """
    assert num_inputs <= _NI_PAD, "packed-slab layout requires num_inputs <= 8"
    assert hidden_size == 64, "packed-slab layout assumes hidden_size == 64"
    H, H2 = hidden_size, 2 * hidden_size
    rows = _ROW_W2 + H2

    w1 = jnp.concatenate([params["wa1"], params["wc1"]], axis=1)        # (ni, 2H)
    b1 = jnp.concatenate([params["ba1"], params["bc1"]], axis=1)[0]     # (2H,)
    b2 = jnp.concatenate([params["ba2"], params["bc2"]], axis=1)[0]     # (2H,)
    w2 = jnp.zeros((H2, H2), jnp.float32)
    w2 = w2.at[:H, :H].set(params["wa2"]).at[H:, H:].set(params["wc2"])
    wcl_row = jnp.zeros((H2,), jnp.float32).at[H:].set(params["wcl"][:, 0])

    slab = jnp.zeros((rows, H2), jnp.float32)
    slab = slab.at[:num_inputs, :].set(w1)
    slab = slab.at[_ROW_B1, :].set(b1)
    slab = slab.at[_ROW_B2, :].set(b2)
    slab = slab.at[_ROW_WCL, :].set(wcl_row)
    slab = slab.at[_ROW_BCL, 0].set(params["bcl"][0, 0])
    slab = slab.at[_ROW_W2:_ROW_W2 + H2, :].set(w2)
    return slab.astype(dtype)


if __name__ == "__main__":
    key = jax.random.PRNGKey(0)
    k_param, k_x1, k_x2 = jax.random.split(key, 3)

    NUM_INPUTS, HIDDEN = 4, 64
    params = make_params(k_param, NUM_INPUTS, HIDDEN)

    # plain-JAX reference (unfused, original parameter layout)
    def ref(x):
        hc = jnp.tanh(x @ params["wc1"] + params["bc1"])
        hc = jnp.tanh(hc @ params["wc2"] + params["bc2"])
        ha = jnp.tanh(x @ params["wa1"] + params["ba1"])
        ha = jnp.tanh(ha @ params["wa2"] + params["ba2"])
        return hc @ params["wcl"] + params["bcl"], ha

    packed_f32 = pack_params(params, NUM_INPUTS, HIDDEN, dtype=jnp.float32)

    # --- 1) small batch, all-f32 (v5e-style) path, tight numerical check ----
    B1 = 8
    x1 = jax.random.normal(k_x1, (B1, NUM_INPUTS), dtype=jnp.float32)
    rnn_hxs = jnp.zeros((B1, 1), jnp.float32)
    masks = jnp.ones((B1, 1), jnp.float32)

    x1 = print_forward(x1)  # the literal `Print` module (identity copy kernel)

    v1, a1, r1 = mlpbase_forward(x1, rnn_hxs, masks, packed_f32,
                                 num_inputs=NUM_INPUTS, hidden_size=HIDDEN)
    jax.block_until_ready((v1, a1, r1))
    v1r, a1r = ref(x1)
    assert v1.shape == (B1, 1) and a1.shape == (B1, HIDDEN)
    assert jnp.allclose(v1, v1r, atol=1e-4), float(jnp.max(jnp.abs(v1 - v1r)))
    assert jnp.allclose(a1, a1r, atol=1e-4), float(jnp.max(jnp.abs(a1 - a1r)))

    # --- 2) non-multiple batch -> cdiv tiling + row padding + 2-block grid ---
    B2 = 300
    x2 = jax.random.normal(k_x2, (B2, NUM_INPUTS), dtype=jnp.float32)
    v2, a2, _ = mlpbase_forward(
        x2, jnp.zeros((B2, 1), jnp.float32), jnp.ones((B2, 1), jnp.float32),
        packed_f32, num_inputs=NUM_INPUTS, hidden_size=HIDDEN)
    jax.block_until_ready((v2, a2))
    v2r, a2r = ref(x2)
    assert v2.shape == (B2, 1) and a2.shape == (B2, HIDDEN)
    assert jnp.allclose(v2, v2r, atol=1e-4), float(jnp.max(jnp.abs(v2 - v2r)))
    assert jnp.allclose(a2, a2r, atol=1e-4), float(jnp.max(jnp.abs(a2 - a2r)))

    # --- 3) bf16 MXU-operand / bf16-output path (v6e / v7x), loose check -----
    packed_bf16 = pack_params(params, NUM_INPUTS, HIDDEN, dtype=jnp.bfloat16)
    v3, a3, _ = mlpbase_forward(
        x2, jnp.zeros((B2, 1), jnp.float32), jnp.ones((B2, 1), jnp.float32),
        packed_bf16, num_inputs=NUM_INPUTS, hidden_size=HIDDEN,
        compute_dtype=jnp.bfloat16, out_dtype=jnp.bfloat16)
    jax.block_until_ready((v3, a3))
    assert jnp.allclose(v3.astype(jnp.float32), v2r, atol=2.5e-1)
    assert jnp.allclose(a3.astype(jnp.float32), a2r, atol=1e-1)

    print("KERNEL_OK")
</pallas_src>

<mosaic_0001>
module attributes {stable_mosaic.version = 11 : i64} {
  func.func @_identity_kernel(%arg0: memref<8x4xf32, #tpu.memory_space<vmem>>, %arg1: memref<8x4xf32, #tpu.memory_space<vmem>>) attributes {dimension_semantics = [], scalar_prefetch = 0 : i64, scratch_operands = 0 : i64, tpu.core_type = #tpu.core_type<tc>} {
    %c0 = arith.constant 0 : index
    %c0_0 = arith.constant 0 : index
    %0 = vector.load %arg0[%c0, %c0_0] : memref<8x4xf32, #tpu.memory_space<vmem>>, vector<8x4xf32>
    %c0_1 = arith.constant 0 : index
    %c0_2 = arith.constant 0 : index
    %1 = vector.load %arg1[%c0_1, %c0_2] : memref<8x4xf32, #tpu.memory_space<vmem>>, vector<8x4xf32>
    tpu.vector_store %arg1[%c0_1, %c0_2], %0 {strides = array<i32>} : memref<8x4xf32, #tpu.memory_space<vmem>>, vector<8x4xf32>,
    return
  }
}

</mosaic_0001>

<llo_original>
// kernel: tpu_custom_call.1
$region0: #{tpu_custom_call.1}
  #allocation0 [shape = 'u32[]', space=smem, size = 0x4, offset = 0x4, fixed_abs, tag = 'smem constant byte address 0x4 - core index']
  #allocation1 [shape = 'u32[144,128]{1,0:T(1,128)}', space=vmem, size = 0x12000, scoped, tag = 'internal scratch']
  %s0 = inlined_call_operand.vmem [shape: f32[8,4], index: 0, kind: input, shape index: {}]
  %s1 = inlined_call_operand.vmem [shape: f32[8,4], index: 1, kind: output, shape index: {}]
  %s2 = sld [smem:[#allocation0]]
  $region14: #{tpu_custom_call.1} parent=0
    _
  %s4 = ssub.s32 1, %s2
  %s5 = scalar_select 0, %s4, %s2
  // Predicated region
  $region2: #{tpu_custom_call.1} parent=0 // pred_check
    _
  $region3: #{tpu_custom_call.1} parent=0 // pred_check_branch
    %7 = sbr.rel (0) target = $region5
  $region4: #{tpu_custom_call.1} parent=0 // pred_region
    _
  $region5: #{tpu_custom_call.1} parent=0 // pred_fallthru
    _
  %v8 = vld [vmem:[%s0] sm:$0xff]
  %vm9 = vcmask 31744
  %10 = vst.msk [vmem:[%s1] sm:$0xff] %vm9, %v8
  // Predicated region
  $region6: #{tpu_custom_call.1} parent=0 // pred_check
    _
  $region7: #{tpu_custom_call.1} parent=0 // pred_check_branch
    %12 = sbr.rel (0) target = $region9
  $region8: #{tpu_custom_call.1} parent=0 // pred_region
    _
  $region9: #{tpu_custom_call.1} parent=0 // pred_fallthru
    _
  // Predicated region
  $region10: #{tpu_custom_call.1} parent=0 // pred_check
    _
  $region11: #{tpu_custom_call.1} parent=0 // pred_check_branch
    %14 = sbr.rel (0) target = $region13
  $region12: #{tpu_custom_call.1} parent=0 // pred_region
    _
  $region13: #{tpu_custom_call.1} parent=0 // pred_fallthru
    _

</llo_original>
